<compile_context>
chip_gen: v5e
topology: v5e:2x2
jax: 0.10.0
libtpu: 0.0.40
codegen_flags: <defaults>
</compile_context>

<pallas_src>
import jax
import jax.numpy as jnp
from jax.experimental import pallas as pl
from jax.experimental.pallas import tpu as pltpu

NEG_SLOPE = 0.01      # nn.LeakyReLU default negative_slope
BN_EPS = 1e-5         # nn.BatchNorm3d default eps
TS_MAX = 8192         # lane tile (spatial/M dimension) for both kernels


def _round_up(x, m):
    return ((x + m - 1) // m) * m


# ---------------------------------------------------------------- kernels ---

def _conv_stats_kernel(col_ref, w_ref, y_ref, stats_ref):
    """(Cout, K) @ (K, TS) MXU tile + per-tile partial BN statistics.

    col_ref: (K, TS) bf16, w_ref: (Cout, K) bf16, y_ref: (Cout, TS) bf16,
    stats_ref: (Cout, 2) f32 with [:,0]=sum, [:,1]=sum of squares.
    """
    y = jnp.dot(w_ref[...], col_ref[...], preferred_element_type=jnp.float32)
    y_ref[...] = y.astype(y_ref.dtype)
    # cross-lane (XLU) reductions; zero-padded spatial columns contribute 0
    stats_ref[:, 0:1] = jnp.sum(y, axis=-1, keepdims=True)
    stats_ref[:, 1:2] = jnp.sum(y * y, axis=-1, keepdims=True)


def _bn_act_kernel(y_ref, scale_ref, shift_ref, o_ref):
    """Lane-dense fused per-channel affine (BatchNorm) + LeakyReLU."""
    y = y_ref[...].astype(jnp.float32) * scale_ref[...] + shift_ref[...]
    o_ref[...] = jnp.where(y >= 0.0, y, NEG_SLOPE * y)


# ------------------------------------------------------------------- glue ---

def _im2col_3d_T(x, ksize, stride, pad):
    """x: (N, C, D, H, W) -> col^T: (N, C*kd*kh*kw, Do*Ho*Wo).

    Feature (K) order is (cin, kd, kh, kw), matching w.reshape(Cout, -1).
    No transpose pass: the spatial/M dimension stays last (lane-dense).
    """
    N, C, D, H, W = x.shape
    kd, kh, kw = ksize
    xp = jnp.pad(x, ((0, 0), (0, 0), (pad, pad), (pad, pad), (pad, pad)))
    Do = (D + 2 * pad - kd) // stride + 1
    Ho = (H + 2 * pad - kh) // stride + 1
    Wo = (W + 2 * pad - kw) // stride + 1
    patches = []
    for a in range(kd):
        for b in range(kh):
            for c in range(kw):
                patches.append(
                    xp[:, :,
                       a:a + (Do - 1) * stride + 1:stride,
                       b:b + (Ho - 1) * stride + 1:stride,
                       c:c + (Wo - 1) * stride + 1:stride])
    col = jnp.stack(patches, axis=2)                       # (N, C, k^3, Do, Ho, Wo)
    col = col.reshape(N, C * kd * kh * kw, Do * Ho * Wo)   # K order (cin, kd, kh, kw)
    return col, (Do, Ho, Wo)


def conv3d_bn_leakyrelu(x, w, gamma, beta, *, ksize, stride, pad):
    """BasicConv3d (bias=False) -> BatchNorm3d (batch stats) -> LeakyReLU."""
    N = x.shape[0]
    Cout = w.shape[0]

    # bf16 im2col^T: halves the k^3-expanded HBM traffic, feeds the bf16 MXU.
    colT, (Do, Ho, Wo) = _im2col_3d_T(x.astype(jnp.bfloat16), ksize, stride, pad)
    _, K, Ms = colT.shape

    # Lane tile over the spatial/M dimension.
    Ms_pad = _round_up(Ms, 128)
    TS = min(TS_MAX, Ms_pad)
    if N == 1 and Ms_pad > 128:
        # keep >= 2 grid steps so both v7x TensorCores get work
        TS = min(TS, _round_up(pl.cdiv(Ms_pad, 2), 128))
    Ms_p = _round_up(Ms, TS)
    n_tiles = Ms_p // TS
    if Ms_p != Ms:   # zero columns contribute exactly 0 to sum / sumsq
        colT = jnp.pad(colT, ((0, 0), (0, 0), (0, Ms_p - Ms)))

    wf = w.reshape(Cout, K).astype(jnp.bfloat16)           # (Cout, K)

    cost1 = pl.CostEstimate(
        flops=2 * N * Ms_p * K * Cout,
        transcendentals=0,
        bytes_accessed=(N * K * Ms_p * 2 + Cout * K * 2
                        + N * Ms_p * Cout * 2 + N * n_tiles * Cout * 2 * 4))

    yT, part_stats = pl.pallas_call(
        _conv_stats_kernel,
        out_shape=(jax.ShapeDtypeStruct((N, Cout, Ms_p), jnp.bfloat16),
                   jax.ShapeDtypeStruct((N, n_tiles, Cout, 2), jnp.float32)),
        grid_spec=pltpu.PrefetchScalarGridSpec(
            num_scalar_prefetch=0,
            grid=(N, n_tiles),
            in_specs=[pl.BlockSpec((None, K, TS), lambda n, i: (n, 0, i)),
                      pl.BlockSpec((Cout, K), lambda n, i: (0, 0))],
            out_specs=[pl.BlockSpec((None, Cout, TS), lambda n, i: (n, 0, i)),
                       pl.BlockSpec((None, None, Cout, 2),
                                    lambda n, i: (n, i, 0, 0))]),
        compiler_params=pltpu.CompilerParams(
            dimension_semantics=("parallel", "parallel")),
        cost_estimate=cost1,
    )(colT, wf)

    # training-mode BatchNorm3d: batch mean + biased batch variance over (N,D,H,W)
    M = N * Ms
    stats = jnp.sum(part_stats, axis=(0, 1))               # (Cout, 2)
    mean = stats[:, 0] / M
    var = jnp.maximum(stats[:, 1] / M - mean * mean, 0.0)  # guard E[y^2]-E[y]^2
    scale = gamma / jnp.sqrt(var + BN_EPS)
    shift = beta - mean * scale
    scale_c = scale.reshape(Cout, 1).astype(jnp.float32)
    shift_c = shift.reshape(Cout, 1).astype(jnp.float32)

    cost2 = pl.CostEstimate(
        flops=4 * N * Ms_p * Cout,
        transcendentals=0,
        bytes_accessed=N * Ms_p * Cout * (2 + 4) + 2 * Cout * 4)

    # lane-dense fused BatchNorm + LeakyReLU, written directly channel-major
    out_cM = pl.pallas_call(
        _bn_act_kernel,
        out_shape=jax.ShapeDtypeStruct((N, Cout, Ms_p), jnp.float32),
        grid_spec=pltpu.PrefetchScalarGridSpec(
            num_scalar_prefetch=0,
            grid=(N, n_tiles),
            in_specs=[pl.BlockSpec((None, Cout, TS), lambda n, i: (n, 0, i)),
                      pl.BlockSpec((Cout, 1), lambda n, i: (0, 0)),
                      pl.BlockSpec((Cout, 1), lambda n, i: (0, 0))],
            out_specs=pl.BlockSpec((None, Cout, TS), lambda n, i: (n, 0, i))),
        compiler_params=pltpu.CompilerParams(
            dimension_semantics=("parallel", "parallel")),
        cost_estimate=cost2,
    )(yT, scale_c, shift_c)

    # free reshape when Ms_p == Ms (no NCDHW transpose pass any more)
    out = out_cM[:, :, :Ms].reshape(N, Cout, Do, Ho, Wo)
    return out  # (N, Cout, Do, Ho, Wo)


def simple_conv_layer_bn_3d_forward(params, seqs, seqL=None, *, ksize, stride, pad):
    """Pallas re-implementation of SimpleConvLayerBN_3D.forward(seqs, seqL)."""
    del seqL  # unused by the PyTorch forward as well
    return conv3d_bn_leakyrelu(seqs, params['w'], params['gamma'], params['beta'],
                               ksize=ksize, stride=stride, pad=pad)


def init_params(key, in_ch, out_ch, ksize):
    """Deterministic synthetic parameters (shapes from SimpleConvLayerBN_3D)."""
    kd, kh, kw = ksize
    fan_in = in_ch * kd * kh * kw
    w = (jax.random.normal(key, (out_ch, in_ch, kd, kh, kw), jnp.float32)
         / jnp.sqrt(float(fan_in)))
    return {
        'w': w,                                        # BasicConv3d (bias=False)
        'gamma': jnp.ones((out_ch,), jnp.float32),     # BatchNorm3d default init
        'beta': jnp.zeros((out_ch,), jnp.float32),
    }


if __name__ == "__main__":
    key = jax.random.PRNGKey(0)
    kx, kp = jax.random.split(key)

    # small shapes: batch=2, channels=4, depth=8, spatial=16x16, cfg "simple-4"
    N, C, D, H, W = 2, 4, 8, 16, 16
    cfg = "simple-4"
    out_ch = int(cfg.split('-')[1])
    ksize, stride, pad = (3, 3, 3), 1, 1

    seqs = jax.random.normal(kx, (N, C, D, H, W), jnp.float32)
    seqL = jnp.full((N,), D, jnp.int32)   # unused, as in the PyTorch forward
    params = init_params(kp, C, out_ch, ksize)

    out = simple_conv_layer_bn_3d_forward(params, seqs, seqL,
                                          ksize=ksize, stride=stride, pad=pad)
    out = jax.block_until_ready(out)

    assert out.shape == (N, out_ch, D, H, W)
    assert bool(jnp.all(jnp.isfinite(out)))
    print("KERNEL_OK")
</pallas_src>

<mosaic_0001>
module attributes {stable_mosaic.version = 11 : i64} {
  func.func @_conv_stats_kernel(%arg0: i32, %arg1: i32, %arg2: memref<1x108x2048xbf16, #tpu.memory_space<vmem>>, %arg3: memref<4x108xbf16, #tpu.memory_space<vmem>>, %arg4: memref<1x4x2048xbf16, #tpu.memory_space<vmem>>, %arg5: memref<1x1x4x2xf32, #tpu.memory_space<vmem>>) attributes {dimension_semantics = [#tpu.dimension_semantics<parallel>, #tpu.dimension_semantics<parallel>], iteration_bounds = array<i64: 2, 1>, scalar_prefetch = 0 : i64, scratch_operands = 0 : i64, tpu.core_type = #tpu.core_type<tc>, window_params = [{transform_indices = @transform_0, window_bounds = array<i64: 1, 108, 2048>}, {pipeline_mode = #tpu.pipeline_mode<synchronous>, transform_indices = @transform_1, window_bounds = array<i64: 4, 108>}, {transform_indices = @transform_2, window_bounds = array<i64: 1, 4, 2048>}, {transform_indices = @transform_3, window_bounds = array<i64: 1, 1, 4, 2>}]} {
    %c0 = arith.constant 0 : index
    %c0_0 = arith.constant 0 : index
    %0 = vector.load %arg3[%c0, %c0_0] : memref<4x108xbf16, #tpu.memory_space<vmem>>, vector<4x108xbf16>
    %c0_1 = arith.constant 0 : index
    %c0_2 = arith.constant 0 : index
    %c0_3 = arith.constant 0 : index
    %1 = vector.load %arg2[%c0_1, %c0_2, %c0_3] : memref<1x108x2048xbf16, #tpu.memory_space<vmem>>, vector<1x108x2048xbf16>
    %2 = vector.shape_cast %1 : vector<1x108x2048xbf16> to vector<108x2048xbf16>
    %cst = arith.constant dense<0.000000e+00> : vector<4x2048xf32>
    %3 = tpu.matmul %0, %2, %cst {dimension_numbers = #tpu.dot_dimension_numbers<[1], [0], [0], [1], [0, 0, 1, 1], [], []>} : vector<4x108xbf16>, vector<108x2048xbf16>, vector<4x2048xf32> -> vector<4x2048xf32>
    %4 = arith.truncf %3 : vector<4x2048xf32> to vector<4x2048xbf16>
    %c0_4 = arith.constant 0 : index
    %c0_5 = arith.constant 0 : index
    %c0_6 = arith.constant 0 : index
    %5 = vector.load %arg4[%c0_4, %c0_5, %c0_6] : memref<1x4x2048xbf16, #tpu.memory_space<vmem>>, vector<1x4x2048xbf16>
    %6 = vector.shape_cast %5 : vector<1x4x2048xbf16> to vector<4x2048xbf16>
    %7 = vector.shape_cast %4 : vector<4x2048xbf16> to vector<1x4x2048xbf16>
    tpu.vector_store %arg4[%c0_4, %c0_5, %c0_6], %7 {strides = array<i32>} : memref<1x4x2048xbf16, #tpu.memory_space<vmem>>, vector<1x4x2048xbf16>,
    %cst_7 = arith.constant dense<0.000000e+00> : vector<4xf32>
    %8 = vector.multi_reduction <add>, %3, %cst_7 [1] : vector<4x2048xf32> to vector<4xf32>
    %9 = vector.shape_cast %8 : vector<4xf32> to vector<4x1xf32>
    %c0_8 = arith.constant 0 : index
    %c0_9 = arith.constant 0 : index
    %c0_10 = arith.constant 0 : index
    %c0_11 = arith.constant 0 : index
    %10 = vector.load %arg5[%c0_8, %c0_9, %c0_10, %c0_11] : memref<1x1x4x2xf32, #tpu.memory_space<vmem>>, vector<1x1x4x1xf32>
    %11 = vector.shape_cast %10 : vector<1x1x4x1xf32> to vector<4x1xf32>
    %12 = vector.shape_cast %9 : vector<4x1xf32> to vector<1x1x4x1xf32>
    tpu.vector_store %arg5[%c0_8, %c0_9, %c0_10, %c0_11], %12 {strides = array<i32>} : memref<1x1x4x2xf32, #tpu.memory_space<vmem>>, vector<1x1x4x1xf32>,
    %13 = arith.mulf %3, %3 : vector<4x2048xf32>
    %cst_12 = arith.constant dense<0.000000e+00> : vector<4xf32>
    %14 = vector.multi_reduction <add>, %13, %cst_12 [1] : vector<4x2048xf32> to vector<4xf32>
    %15 = vector.shape_cast %14 : vector<4xf32> to vector<4x1xf32>
    %c0_13 = arith.constant 0 : index
    %c0_14 = arith.constant 0 : index
    %c0_15 = arith.constant 0 : index
    %c1 = arith.constant 1 : index
    %16 = vector.load %arg5[%c0_13, %c0_14, %c0_15, %c1] : memref<1x1x4x2xf32, #tpu.memory_space<vmem>>, vector<1x1x4x1xf32>
    %17 = vector.shape_cast %16 : vector<1x1x4x1xf32> to vector<4x1xf32>
    %18 = vector.shape_cast %15 : vector<4x1xf32> to vector<1x1x4x1xf32>
    tpu.vector_store %arg5[%c0_13, %c0_14, %c0_15, %c1], %18 {strides = array<i32>} : memref<1x1x4x2xf32, #tpu.memory_space<vmem>>, vector<1x1x4x1xf32>,
    return
  }
  func.func @transform_0(%arg0: i32, %arg1: i32) -> (i32, i32, i32) {
    %c0_i32 = arith.constant 0 : i32
    %c0_i32_0 = arith.constant 0 : i32
    return %arg0, %c0_i32, %arg1 : i32, i32, i32
  }
  func.func @transform_1(%arg0: i32, %arg1: i32) -> (i32, i32) {
    %c0_i32 = arith.constant 0 : i32
    %c0_i32_0 = arith.constant 0 : i32
    %c0_i32_1 = arith.constant 0 : i32
    return %c0_i32, %c0_i32_0 : i32, i32
  }
  func.func @transform_2(%arg0: i32, %arg1: i32) -> (i32, i32, i32) {
    %c0_i32 = arith.constant 0 : i32
    %c0_i32_0 = arith.constant 0 : i32
    return %arg0, %c0_i32, %arg1 : i32, i32, i32
  }
  func.func @transform_3(%arg0: i32, %arg1: i32) -> (i32, i32, i32, i32) {
    %c0_i32 = arith.constant 0 : i32
    %c0_i32_0 = arith.constant 0 : i32
    %c0_i32_1 = arith.constant 0 : i32
    return %arg0, %arg1, %c0_i32, %c0_i32_0 : i32, i32, i32, i32
  }
}

</mosaic_0001>

<llo_original>
// kernel: tpu_custom_call.1
$region0: #{tpu_custom_call.1}
  #allocation0 [shape = 'u32[]', space=smem, size = 0x4, offset = 0x4, fixed_abs, tag = 'smem constant byte address 0x4 - core index']
  #allocation1 [shape = 'u32[72,128]{1,0:T(1,128)}', space=vmem, size = 0x9000, scoped, tag = 'internal scratch']
  %s0 = inlined_call_operand.vmem [shape: bf16[2,108,2048], index: 0, kind: input, shape index: {}]
  %s1 = inlined_call_operand.vmem [shape: bf16[4,108], index: 1, kind: input, shape index: {}]
  %s2 = inlined_call_operand.hbm [shape: bf16[2,4,2048], index: 2, kind: output, shape index: {0}]
  %s3 = inlined_call_operand.vmem [shape: f32[2,1,4,2], index: 3, kind: output, shape index: {1}]
  %4 = xla_tuple %s2, %s3
  %s5 = sld [smem:[#allocation0]]
  $region49: #{tpu_custom_call.1} parent=0
    _
  %s7 = ssub.s32 1, %s5
  %s8 = scalar_select 0, %s7, %s5
  $region1: #{tpu_custom_call.1} parent=0
    #allocation2 [shape = 'u8[32768]{0}', space=vmem, size = 0x8000, scoped, tag = 'output window, operand 0']
    #allocation3 [shape = 's32[2]{0}', space=sflag, size = 0x8, scoped, tag = 'scoped memory for tpu_custom_call.1']
    %9 = vsyncpa [#allocation3], 0
    %s10 = scalar_lea.sflag [#allocation3], 1
    %11 = vsyncpa %s10, 0
    loop: start=0, step=1, limit=4
    $region2: #{tpu_custom_call.1} parent=1 // loop_pre_header
      _
    $region3: #{tpu_custom_call.1} parent=1 // loop_header
      %s13 = sphi 0, %s17
      %p14 = scmp.ge.s32.totalorder %s13, 4
      %s20 = sphi 0, %s32
      %s21 = sphi 0, %s28
      %s22 = sphi 0, %s20
      %s23 = sphi 0, %s21
      %s24 = sphi 0, %s22
      %s25 = sphi 0, %s23
      %s37 = sphi 0, %s39
      %s40 = sphi 0, %s37
      %s41 = sphi 0, %s40
      %s57 = sphi 0, %s41
      %s61 = sphi 0, %s61
      %s63 = sphi 0, %s61
      %s64 = sphi 0, %s63
      %s78 = sphi 0, %s64
      %s86 = sphi 0, %s88
      %s89 = sphi 0, %s86
      %s90 = sphi 0, %s89
      %s106 = sphi 0, %s90
      %s114 = sphi 0, %s116
      %s117 = sphi 0, %s114
      %s118 = sphi 0, %s117
      %s134 = sphi 0, %s118
    $region4: #{tpu_custom_call.1} parent=1 // loop_header_branch
      %16 = sbr.rel (%p14) target = $region8
    $region5: #{tpu_custom_call.1} parent=1 // loop_body
      %s18 = ssub.s32 %s13, 1
      %s19 = ssub.s32 %s13, 2
      %s26 = sadd.s32 1, %s21
      %p27 = scmp.ge.s32.totalorder %s26, 1
      %s28 = scalar_select %p27, 0, %s26
      %s29 = sadd.s32 1, %s20
      %s30 = scalar_select %p27, %s29, %s20
      %p31 = scmp.ge.s32.totalorder %s30, 2
      %s32 = scalar_select %p31, 0, %s30
      %s33 = ssub.s32 %s20, %s32
      %s34 = ssub.s32 %s21, %s28
      %s35 = sor.u32 %s33, %s34
      %p36 = scmp.eq.s32.totalorder %s35, 0
      %s38 = sadd.s32 %s37, 1
      %s39 = scalar_select %p36, %s37, %s38
      %p42 = pneg %p36
      %p43 = scmp.eq.s32.totalorder %s13, 1
      %p44 = por %p42, %p43
      %p45 = scmp.ne.s32.totalorder %s37, %s40
      %p46 = scmp.eq.s32.totalorder %s13, 0
      %p47 = por %p45, %p46
      %p48 = scmp.ne.s32.totalorder %s37, %s40
      %p49 = scmp.eq.s32.totalorder %s18, 1
      %p50 = por %p48, %p49
      %p51 = scmp.ne.s32.totalorder %s40, %s41
      %p52 = scmp.eq.s32.totalorder %s18, 0
      %p53 = por %p51, %p52
      %p54 = scmp.ne.s32.totalorder %s40, %s41
      %p55 = scmp.eq.s32.totalorder %s19, 1
      %p56 = por %p54, %p55
      %p58 = scmp.ne.s32.totalorder %s41, %s57
      %p59 = scmp.eq.s32.totalorder %s19, 0
      %p60 = por %p58, %p59
      %s62 = sadd.s32 %s61, 1
      %p65 = scmp.eq.s32.totalorder %s13, 1
      %p66 = scmp.ne.s32.totalorder %s61, %s63
      %p67 = scmp.eq.s32.totalorder %s13, 0
      %p68 = por %p66, %p67
      %p69 = scmp.ne.s32.totalorder %s61, %s63
      %p70 = scmp.eq.s32.totalorder %s18, 1
      %p71 = por %p69, %p70
      %p72 = scmp.ne.s32.totalorder %s63, %s64
      %p73 = scmp.eq.s32.totalorder %s18, 0
      %p74 = por %p72, %p73
      %p75 = scmp.ne.s32.totalorder %s63, %s64
      %p76 = scmp.eq.s32.totalorder %s19, 1
      %p77 = por %p75, %p76
      %p79 = scmp.ne.s32.totalorder %s64, %s78
      %p80 = scmp.eq.s32.totalorder %s19, 0
      %p81 = por %p79, %p80
      %s82 = ssub.s32 %s20, %s32
      %s83 = ssub.s32 %s21, %s28
      %s84 = sor.u32 %s82, %s83
      %p85 = scmp.eq.s32.totalorder %s84, 0
      %s87 = sadd.s32 %s86, 1
      %s88 = scalar_select %p85, %s86, %s87
      %p91 = pneg %p85
      %p92 = scmp.eq.s32.totalorder %s13, 1
      %p93 = por %p91, %p92
      %p94 = scmp.ne.s32.totalorder %s86, %s89
      %p95 = scmp.eq.s32.totalorder %s13, 0
      %p96 = por %p94, %p95
      %p97 = scmp.ne.s32.totalorder %s86, %s89
      %p98 = scmp.eq.s32.totalorder %s18, 1
      %p99 = por %p97, %p98
      %p100 = scmp.ne.s32.totalorder %s89, %s90
      %p101 = scmp.eq.s32.totalorder %s18, 0
      %p102 = por %p100, %p101
      %p103 = scmp.ne.s32.totalorder %s89, %s90
      %p104 = scmp.eq.s32.totalorder %s19, 1
      %p105 = por %p103, %p104
      %p107 = scmp.ne.s32.totalorder %s90, %s106
      %p108 = scmp.eq.s32.totalorder %s19, 0
      %p109 = por %p107, %p108
      %s110 = ssub.s32 %s20, %s32
      %s111 = ssub.s32 %s21, %s28
      %s112 = sor.u32 %s110, %s111
      %p113 = scmp.eq.s32.totalorder %s112, 0
      %s115 = sadd.s32 %s114, 1
      %s116 = scalar_select %p113, %s114, %s115
      %p119 = pneg %p113
      %p120 = scmp.eq.s32.totalorder %s13, 1
      %p121 = por %p119, %p120
      %p122 = scmp.ne.s32.totalorder %s114, %s117
      %p123 = scmp.eq.s32.totalorder %s13, 0
      %p124 = por %p122, %p123
      %p125 = scmp.ne.s32.totalorder %s114, %s117
      %p126 = scmp.eq.s32.totalorder %s18, 1
      %p127 = por %p125, %p126
      %p128 = scmp.ne.s32.totalorder %s117, %s118
      %p129 = scmp.eq.s32.totalorder %s18, 0
      %p130 = por %p128, %p129
      %p131 = scmp.ne.s32.totalorder %s117, %s118
      %p132 = scmp.eq.s32.totalorder %s19, 1
      %p133 = por %p131, %p132
      %p135 = scmp.ne.s32.totalorder %s118, %s134
      %p136 = scmp.eq.s32.totalorder %s19, 0
      %p137 = por %p135, %p136
      %p138 = scmp.le.s32.totalorder 1, %s13
      %p139 = scmp.lt.s32.totalorder %s13, 3
      %p140 = pnand %p138, %p139
      %p141 = pneg %p140
      // Predicated region
      $region9: #{tpu_custom_call.1} parent=5 // pred_check
        _
      $region10: #{tpu_custom_call.1} parent=5 // pred_check_branch
        %143 = sbr.rel (%p140) target = $region12
      $region11: #{tpu_custom_call.1} parent=5 // pred_region
        %s144 = ssub.s32 %s13, 1
        // Predicated region
        $region13: #{tpu_custom_call.1} parent=11 // pred_check
          %p145 = pneg %p74
        $region14: #{tpu_custom_call.1} parent=11 // pred_check_branch
          %147 = sbr.rel (%p145) target = $region16
        $region15: #{tpu_custom_call.1} parent=11 // pred_region
          _
        $region16: #{tpu_custom_call.1} parent=11 // pred_fallthru
          _
      $region12: #{tpu_custom_call.1} parent=5 // pred_fallthru
        _
      %p148 = scmp.lt.s32.totalorder %s13, 2
      // Predicated region
      $region17: #{tpu_custom_call.1} parent=5 // pred_check
        %p149 = pneg %p148
      $region18: #{tpu_custom_call.1} parent=5 // pred_check_branch
        %151 = sbr.rel (%p149) target = $region20
      $region19: #{tpu_custom_call.1} parent=5 // pred_region
        // Predicated region
        $region21: #{tpu_custom_call.1} parent=19 // pred_check
          %p152 = pneg %p47
        $region22: #{tpu_custom_call.1} parent=19 // pred_check_branch
          %154 = sbr.rel (%p152) target = $region24
        $region23: #{tpu_custom_call.1} parent=19 // pred_region
          %s155 = smul.u32 16, %s21
          %p156 = scmp.lt.s32.totalorder %s20, 1
          %s157 = scalar_select %p156, %s20, 1
          %p158 = scmp.lt.s32.totalorder %s155, 15
          %s159 = scalar_select %p158, %s155, 15
          %s160 = smul.addr %s157, 224
          %s161 = sadd.s32 %s159, %s160
          %s162 = smul.addr %s161, 4
          %s163 = scalar_lea.vmem %s0, %s162
          %s164 = smul.u32 16, %s21
        $region24: #{tpu_custom_call.1} parent=19 // pred_fallthru
          _
      $region20: #{tpu_custom_call.1} parent=5 // pred_fallthru
        _
      %p165 = scmp.le.s32.totalorder 1, %s13
      %p166 = scmp.lt.s32.totalorder %s13, 3
      %p167 = pnand %p165, %p166
      %p168 = pneg %p167
      // Predicated region
      $region25: #{tpu_custom_call.1} parent=5 // pred_check
        _
      $region26: #{tpu_custom_call.1} parent=5 // pred_check_branch
        %170 = sbr.rel (%p167) target = $region28
      $region27: #{tpu_custom_call.1} parent=5 // pred_region
        %s171 = ssub.s32 %s13, 1
        %s172 = smul.u32 16, %s23
        %p173 = scmp.lt.s32.totalorder %s22, 1
        %s174 = scalar_select %p173, %s22, 1
        %p175 = scmp.lt.s32.totalorder %s172, 15
        %s176 = scalar_select %p175, %s172, 15
        %s177 = smul.addr %s174, 224
        %s178 = sadd.s32 %s176, %s177
        %s179 = smul.addr %s178, 4
        %s180 = scalar_lea.vmem %s0, %s179
        %p181 = pneg %p53
        %p182 = pneg %p50
        %p183 = pneg %p74
        %p184 = pneg %p71
        %p185 = pneg %p102
        %p186 = pneg %p99
        %s187 = sand.u32 %s89, 1
        %s188 = scalar_lea.sflag [#allocation3], %s187
        %s189 = sand.u32 %s89, 1
        %s190 = smul.addr %s189, 32
        %s191 = scalar_lea.vmem [#allocation2], %s190
        %p192 = pneg %p130
        %p193 = pneg %p127
        %p194 = scmp.lt.s32.totalorder %s22, 1
        %s195 = scalar_select %p194, %s22, 1
        %p196 = scmp.lt.s32.totalorder %s23, 0
        %s197 = scalar_select %p196, %s23, 0
        %s198 = sadd.s32 %s197, %s195
        %s199 = smul.addr %s198, 4
        %s200 = scalar_lea.vmem %s3, %s199
        %s201 = smul.u32 16, %s23
        %p202 = scmp.lt.s32.totalorder %s22, 1
        %s203 = scalar_select %p202, %s22, 1
        %p204 = scmp.lt.s32.totalorder %s201, 15
        %s205 = scalar_select %p204, %s201, 15
        %s206 = smul.addr %s203, 224
        %s207 = sadd.s32 %s205, %s206
        %s208 = smul.addr %s207, 4
        %s209 = scalar_lea.vmem %s0, %s208
        %s210 = smul.u32 16, %s23
        %s211 = smul.u32 16, %s23
        %p212 = scmp.lt.s32.totalorder %s22, 1
        %s213 = scalar_select %p212, %s22, 1
        %p214 = scmp.lt.s32.totalorder %s23, 0
        %s215 = scalar_select %p214, %s23, 0
        %s216 = sadd.s32 %s215, %s213
        %s217 = smul.addr %s216, 4
        %s218 = scalar_lea.vmem %s3, %s217
        %v220 = vld [vmem:[%s1] sm:$0x3]
        %v221 = vld [vmem:[%s209] sm:$0xff]
        %v222 = vld [vmem:[%s209 + $0x8] sm:$0xff]
        %v223 = vld [vmem:[%s209 + $0x10] sm:$0xff]
        %v224 = vld [vmem:[%s209 + $0x18] sm:$0xff]
        %v225 = vld [vmem:[%s209 + $0x20] sm:$0xff]
        %v226 = vld [vmem:[%s209 + $0x28] sm:$0xff]
        %v227 = vld [vmem:[%s209 + $0x30] sm:$0xff]
        %v228 = vld [vmem:[%s209 + $0x38] sm:$0xff]
        %v229 = vld [vmem:[%s209 + $0x40] sm:$0xff]
        %v230 = vld [vmem:[%s209 + $0x48] sm:$0xff]
        %v231 = vld [vmem:[%s209 + $0x50] sm:$0xff]
        %v232 = vld [vmem:[%s209 + $0x58] sm:$0xff]
        %v233 = vld [vmem:[%s209 + $0x60] sm:$0xff]
        %v234 = vld [vmem:[%s209 + $0x68] sm:$0xff]
        %v235 = vld [vmem:[%s209 + $0x70] sm:$0xff]
        %v236 = vld [vmem:[%s209 + $0x78] sm:$0xff]
        %v237 = vld [vmem:[%s209 + $0x80] sm:$0xff]
        %v238 = vld [vmem:[%s209 + $0x88] sm:$0xff]
        %v239 = vld [vmem:[%s209 + $0x90] sm:$0xff]
        %v240 = vld [vmem:[%s209 + $0x98] sm:$0xff]
        %v241 = vld [vmem:[%s209 + $0xa0] sm:$0xff]
        %v242 = vld [vmem:[%s209 + $0xa8] sm:$0xff]
        %v243 = vld [vmem:[%s209 + $0xb0] sm:$0xff]
        %v244 = vld [vmem:[%s209 + $0xb8] sm:$0xff]
        %v245 = vld [vmem:[%s209 + $0xc0] sm:$0xff]
        %v246 = vld [vmem:[%s209 + $0xc8] sm:$0xff]
        %v247 = vld [vmem:[%s209 + $0xd0] sm:$0xff]
        %v248 = vld [vmem:[%s209 + $0xd8] sm:$0xff]
        %v249 = vld [vmem:[%s209 + $0xe0] sm:$0xff]
        %v250 = vld [vmem:[%s209 + $0xe8] sm:$0xff]
        %v251 = vld [vmem:[%s209 + $0xf0] sm:$0xff]
        %v252 = vld [vmem:[%s209 + $0xf8] sm:$0xff]
        %v253 = vld [vmem:[%s209 + $0x100] sm:$0xff]
        %v254 = vld [vmem:[%s209 + $0x108] sm:$0xff]
        %v255 = vld [vmem:[%s209 + $0x110] sm:$0xff]
        %v256 = vld [vmem:[%s209 + $0x118] sm:$0xff]
        %v257 = vld [vmem:[%s209 + $0x120] sm:$0xff]
        %v258 = vld [vmem:[%s209 + $0x128] sm:$0xff]
        %v259 = vld [vmem:[%s209 + $0x130] sm:$0xff]
        %v260 = vld [vmem:[%s209 + $0x138] sm:$0xff]
        %v261 = vld [vmem:[%s209 + $0x140] sm:$0xff]
        %v262 = vld [vmem:[%s209 + $0x148] sm:$0xff]
        %v263 = vld [vmem:[%s209 + $0x150] sm:$0xff]
        %v264 = vld [vmem:[%s209 + $0x158] sm:$0xff]
        %v265 = vld [vmem:[%s209 + $0x160] sm:$0xff]
        %v266 = vld [vmem:[%s209 + $0x168] sm:$0xff]
        %v267 = vld [vmem:[%s209 + $0x170] sm:$0xff]
        %v268 = vld [vmem:[%s209 + $0x178] sm:$0xff]
        %v269 = vld [vmem:[%s209 + $0x180] sm:$0xff]
        %v270 = vld [vmem:[%s209 + $0x188] sm:$0xff]
        %v271 = vld [vmem:[%s209 + $0x190] sm:$0xff]
        %v272 = vld [vmem:[%s209 + $0x198] sm:$0xff]
        %v273 = vld [vmem:[%s209 + $0x1a0] sm:$0xff]
        %v274 = vld [vmem:[%s209 + $0x1a8] sm:$0xff]
        %v275 = vld [vmem:[%s209 + $0x1b0] sm:$0xff]
        %v276 = vld [vmem:[%s209 + $0x1b8] sm:$0xff]
        %v277 = vld [vmem:[%s209 + $0x1c0] sm:$0xff]
        %v278 = vld [vmem:[%s209 + $0x1c8] sm:$0xff]
        %v279 = vld [vmem:[%s209 + $0x1d0] sm:$0xff]
        %v280 = vld [vmem:[%s209 + $0x1d8] sm:$0xff]
        %v281 = vld [vmem:[%s209 + $0x1e0] sm:$0xff]
        %v282 = vld [vmem:[%s209 + $0x1e8] sm:$0xff]
        %v283 = vld [vmem:[%s209 + $0x1f0] sm:$0xff]
        %v284 = vld [vmem:[%s209 + $0x1f8] sm:$0xff]
        %v285 = vld [vmem:[%s209 + $0x200] sm:$0xff]
        %v286 = vld [vmem:[%s209 + $0x208] sm:$0xff]
        %v287 = vld [vmem:[%s209 + $0x210] sm:$0xff]
        %v288 = vld [vmem:[%s209 + $0x218] sm:$0xff]
        %v289 = vld [vmem:[%s209 + $0x220] sm:$0xff]
        %v290 = vld [vmem:[%s209 + $0x228] sm:$0xff]
        %v291 = vld [vmem:[%s209 + $0x230] sm:$0xff]
        %v292 = vld [vmem:[%s209 + $0x238] sm:$0xff]
        %v293 = vld [vmem:[%s209 + $0x240] sm:$0xff]
        %v294 = vld [vmem:[%s209 + $0x248] sm:$0xff]
        %v295 = vld [vmem:[%s209 + $0x250] sm:$0xff]
        %v296 = vld [vmem:[%s209 + $0x258] sm:$0xff]
        %v297 = vld [vmem:[%s209 + $0x260] sm:$0xff]
        %v298 = vld [vmem:[%s209 + $0x268] sm:$0xff]
        %v299 = vld [vmem:[%s209 + $0x270] sm:$0xff]
        %v300 = vld [vmem:[%s209 + $0x278] sm:$0xff]
        %v301 = vld [vmem:[%s209 + $0x280] sm:$0xff]
        %v302 = vld [vmem:[%s209 + $0x288] sm:$0xff]
        %v303 = vld [vmem:[%s209 + $0x290] sm:$0xff]
        %v304 = vld [vmem:[%s209 + $0x298] sm:$0xff]
        %v305 = vld [vmem:[%s209 + $0x2a0] sm:$0xff]
        %v306 = vld [vmem:[%s209 + $0x2a8] sm:$0xff]
        %v307 = vld [vmem:[%s209 + $0x2b0] sm:$0xff]
        %v308 = vld [vmem:[%s209 + $0x2b8] sm:$0xff]
        %v309 = vld [vmem:[%s209 + $0x2c0] sm:$0xff]
        %v310 = vld [vmem:[%s209 + $0x2c8] sm:$0xff]
        %v311 = vld [vmem:[%s209 + $0x2d0] sm:$0xff]
        %v312 = vld [vmem:[%s209 + $0x2d8] sm:$0xff]
        %v313 = vld [vmem:[%s209 + $0x2e0] sm:$0xff]
        %v314 = vld [vmem:[%s209 + $0x2e8] sm:$0xff]
        %v315 = vld [vmem:[%s209 + $0x2f0] sm:$0xff]
        %v316 = vld [vmem:[%s209 + $0x2f8] sm:$0xff]
        %v317 = vld [vmem:[%s209 + $0x300] sm:$0xff]
        %v318 = vld [vmem:[%s209 + $0x308] sm:$0xff]
        %v319 = vld [vmem:[%s209 + $0x310] sm:$0xff]
        %v320 = vld [vmem:[%s209 + $0x318] sm:$0xff]
        %v321 = vld [vmem:[%s209 + $0x320] sm:$0xff]
        %v322 = vld [vmem:[%s209 + $0x328] sm:$0xff]
        %v323 = vld [vmem:[%s209 + $0x330] sm:$0xff]
        %v324 = vld [vmem:[%s209 + $0x338] sm:$0xff]
        %v325 = vld [vmem:[%s209 + $0x340] sm:$0x33]
        %v326 = vld [vmem:[%s209 + $0x348] sm:$0x33]
        %v327 = vld [vmem:[%s209 + $0x350] sm:$0x33]
        %v328 = vld [vmem:[%s209 + $0x358] sm:$0x33]
        %v329 = vld [vmem:[%s209 + $0x360] sm:$0x33]
        %v330 = vld [vmem:[%s209 + $0x368] sm:$0x33]
        %v331 = vld [vmem:[%s209 + $0x370] sm:$0x33]
        %v332 = vld [vmem:[%s209 + $0x378] sm:$0x33]
        %v445 = vunpack.c.l.b16 %v221
        %v446 = vunpack.c.h.b16 %v221
        %v447 = vunpack.c.l.b16 %v222
        %v448 = vunpack.c.h.b16 %v222
        %v449 = vunpack.c.l.b16 %v223
        %v450 = vunpack.c.h.b16 %v223
        %v451 = vunpack.c.l.b16 %v224
        %v452 = vunpack.c.h.b16 %v224
        %v453 = vunpack.c.l.b16 %v225
        %v454 = vunpack.c.h.b16 %v225
        %v455 = vunpack.c.l.b16 %v226
        %v456 = vunpack.c.h.b16 %v226
        %v457 = vunpack.c.l.b16 %v227
        %v458 = vunpack.c.h.b16 %v227
        %v459 = vunpack.c.l.b16 %v228
        %v460 = vunpack.c.h.b16 %v228
        %v461 = vunpack.c.l.b16 %v229
        %v462 = vunpack.c.h.b16 %v229
        %v463 = vunpack.c.l.b16 %v230
        %v464 = vunpack.c.h.b16 %v230
        %v465 = vunpack.c.l.b16 %v231
        %v466 = vunpack.c.h.b16 %v231
        %v467 = vunpack.c.l.b16 %v232
        %v468 = vunpack.c.h.b16 %v232
        %v469 = vunpack.c.l.b16 %v233
        %v470 = vunpack.c.h.b16 %v233
        %v471 = vunpack.c.l.b16 %v234
        %v472 = vunpack.c.h.b16 %v234
        %v473 = vunpack.c.l.b16 %v235
        %v474 = vunpack.c.h.b16 %v235
        %v475 = vunpack.c.l.b16 %v236
        %v476 = vunpack.c.h.b16 %v236
        %v477 = vunpack.c.l.b16 %v237
        %v478 = vunpack.c.h.b16 %v237
        %v479 = vunpack.c.l.b16 %v238
        %v480 = vunpack.c.h.b16 %v238
        %v481 = vunpack.c.l.b16 %v239
        %v482 = vunpack.c.h.b16 %v239
        %v483 = vunpack.c.l.b16 %v240
        %v484 = vunpack.c.h.b16 %v240
        %v485 = vunpack.c.l.b16 %v241
        %v486 = vunpack.c.h.b16 %v241
        %v487 = vunpack.c.l.b16 %v242
        %v488 = vunpack.c.h.b16 %v242
        %v489 = vunpack.c.l.b16 %v243
        %v490 = vunpack.c.h.b16 %v243
        %v491 = vunpack.c.l.b16 %v244
        %v492 = vunpack.c.h.b16 %v244
        %v493 = vunpack.c.l.b16 %v245
        %v494 = vunpack.c.h.b16 %v245
        %v495 = vunpack.c.l.b16 %v246
        %v496 = vunpack.c.h.b16 %v246
        %v497 = vunpack.c.l.b16 %v247
        %v498 = vunpack.c.h.b16 %v247
        %v499 = vunpack.c.l.b16 %v248
        %v500 = vunpack.c.h.b16 %v248
        %v501 = vunpack.c.l.b16 %v249
        %v502 = vunpack.c.h.b16 %v249
        %v503 = vunpack.c.l.b16 %v250
        %v504 = vunpack.c.h.b16 %v250
        %v505 = vunpack.c.l.b16 %v251
        %v506 = vunpack.c.h.b16 %v251
        %v507 = vunpack.c.l.b16 %v252
        %v508 = vunpack.c.h.b16 %v252
        %v509 = vunpack.c.l.b16 %v253
        %v510 = vunpack.c.h.b16 %v253
        %v511 = vunpack.c.l.b16 %v254
        %v512 = vunpack.c.h.b16 %v254
        %v513 = vunpack.c.l.b16 %v255
        %v514 = vunpack.c.h.b16 %v255
        %v515 = vunpack.c.l.b16 %v256
        %v516 = vunpack.c.h.b16 %v256
        %v517 = vunpack.c.l.b16 %v257
        %v518 = vunpack.c.h.b16 %v257
        %v519 = vunpack.c.l.b16 %v258
        %v520 = vunpack.c.h.b16 %v258
        %v521 = vunpack.c.l.b16 %v259
        %v522 = vunpack.c.h.b16 %v259
        %v523 = vunpack.c.l.b16 %v260
        %v524 = vunpack.c.h.b16 %v260
        %v525 = vunpack.c.l.b16 %v261
        %v526 = vunpack.c.h.b16 %v261
        %v527 = vunpack.c.l.b16 %v262
        %v528 = vunpack.c.h.b16 %v262
        %v529 = vunpack.c.l.b16 %v263
        %v530 = vunpack.c.h.b16 %v263
        %v531 = vunpack.c.l.b16 %v264
        %v532 = vunpack.c.h.b16 %v264
        %v533 = vunpack.c.l.b16 %v265
        %v534 = vunpack.c.h.b16 %v265
        %v535 = vunpack.c.l.b16 %v266
        %v536 = vunpack.c.h.b16 %v266
        %v537 = vunpack.c.l.b16 %v267
        %v538 = vunpack.c.h.b16 %v267
        %v539 = vunpack.c.l.b16 %v268
        %v540 = vunpack.c.h.b16 %v268
        %v541 = vunpack.c.l.b16 %v269
        %v542 = vunpack.c.h.b16 %v269
        %v543 = vunpack.c.l.b16 %v270
        %v544 = vunpack.c.h.b16 %v270
        %v545 = vunpack.c.l.b16 %v271
        %v546 = vunpack.c.h.b16 %v271
        %v547 = vunpack.c.l.b16 %v272
        %v548 = vunpack.c.h.b16 %v272
        %v549 = vunpack.c.l.b16 %v273
        %v550 = vunpack.c.h.b16 %v273
        %v551 = vunpack.c.l.b16 %v274
        %v552 = vunpack.c.h.b16 %v274
        %v553 = vunpack.c.l.b16 %v275
        %v554 = vunpack.c.h.b16 %v275
        %v555 = vunpack.c.l.b16 %v276
        %v556 = vunpack.c.h.b16 %v276
        %v557 = vunpack.c.l.b16 %v277
        %v558 = vunpack.c.h.b16 %v277
        %v559 = vunpack.c.l.b16 %v278
        %v560 = vunpack.c.h.b16 %v278
        %v561 = vunpack.c.l.b16 %v279
        %v562 = vunpack.c.h.b16 %v279
        %v563 = vunpack.c.l.b16 %v280
        %v564 = vunpack.c.h.b16 %v280
        %v565 = vunpack.c.l.b16 %v281
        %v566 = vunpack.c.h.b16 %v281
        %v567 = vunpack.c.l.b16 %v282
        %v568 = vunpack.c.h.b16 %v282
        %v569 = vunpack.c.l.b16 %v283
        %v570 = vunpack.c.h.b16 %v283
        %v571 = vunpack.c.l.b16 %v284
        %v572 = vunpack.c.h.b16 %v284
        %v573 = vunpack.c.l.b16 %v285
        %v574 = vunpack.c.h.b16 %v285
        %v575 = vunpack.c.l.b16 %v286
        %v576 = vunpack.c.h.b16 %v286
        %v577 = vunpack.c.l.b16 %v287
        %v578 = vunpack.c.h.b16 %v287
        %v579 = vunpack.c.l.b16 %v288
        %v580 = vunpack.c.h.b16 %v288
        %v581 = vunpack.c.l.b16 %v289
        %v582 = vunpack.c.h.b16 %v289
        %v583 = vunpack.c.l.b16 %v290
        %v584 = vunpack.c.h.b16 %v290
        %v585 = vunpack.c.l.b16 %v291
        %v586 = vunpack.c.h.b16 %v291
        %v587 = vunpack.c.l.b16 %v292
        %v588 = vunpack.c.h.b16 %v292
        %v589 = vunpack.c.l.b16 %v293
        %v590 = vunpack.c.h.b16 %v293
        %v591 = vunpack.c.l.b16 %v294
        %v592 = vunpack.c.h.b16 %v294
        %v593 = vunpack.c.l.b16 %v295
        %v594 = vunpack.c.h.b16 %v295
        %v595 = vunpack.c.l.b16 %v296
        %v596 = vunpack.c.h.b16 %v296
        %v597 = vunpack.c.l.b16 %v297
        %v598 = vunpack.c.h.b16 %v297
        %v599 = vunpack.c.l.b16 %v298
        %v600 = vunpack.c.h.b16 %v298
        %v601 = vunpack.c.l.b16 %v299
        %v602 = vunpack.c.h.b16 %v299
        %v603 = vunpack.c.l.b16 %v300
        %v604 = vunpack.c.h.b16 %v300
        %v605 = vunpack.c.l.b16 %v301
        %v606 = vunpack.c.h.b16 %v301
        %v607 = vunpack.c.l.b16 %v302
        %v608 = vunpack.c.h.b16 %v302
        %v609 = vunpack.c.l.b16 %v303
        %v610 = vunpack.c.h.b16 %v303
        %v611 = vunpack.c.l.b16 %v304
        %v612 = vunpack.c.h.b16 %v304
        %v613 = vunpack.c.l.b16 %v305
        %v614 = vunpack.c.h.b16 %v305
        %v615 = vunpack.c.l.b16 %v306
        %v616 = vunpack.c.h.b16 %v306
        %v617 = vunpack.c.l.b16 %v307
        %v618 = vunpack.c.h.b16 %v307
        %v619 = vunpack.c.l.b16 %v308
        %v620 = vunpack.c.h.b16 %v308
        %v621 = vunpack.c.l.b16 %v309
        %v622 = vunpack.c.h.b16 %v309
        %v623 = vunpack.c.l.b16 %v310
        %v624 = vunpack.c.h.b16 %v310
        %v625 = vunpack.c.l.b16 %v311
        %v626 = vunpack.c.h.b16 %v311
        %v627 = vunpack.c.l.b16 %v312
        %v628 = vunpack.c.h.b16 %v312
        %v629 = vunpack.c.l.b16 %v313
        %v630 = vunpack.c.h.b16 %v313
        %v631 = vunpack.c.l.b16 %v314
        %v632 = vunpack.c.h.b16 %v314
        %v633 = vunpack.c.l.b16 %v315
        %v634 = vunpack.c.h.b16 %v315
        %v635 = vunpack.c.l.b16 %v316
        %v636 = vunpack.c.h.b16 %v316
        %v637 = vunpack.c.l.b16 %v317
        %v638 = vunpack.c.h.b16 %v317
        %v639 = vunpack.c.l.b16 %v318
        %v640 = vunpack.c.h.b16 %v318
        %v641 = vunpack.c.l.b16 %v319
        %v642 = vunpack.c.h.b16 %v319
        %v643 = vunpack.c.l.b16 %v320
        %v644 = vunpack.c.h.b16 %v320
        %v645 = vunpack.c.l.b16 %v321
        %v646 = vunpack.c.h.b16 %v321
        %v647 = vunpack.c.l.b16 %v322
        %v648 = vunpack.c.h.b16 %v322
        %v649 = vunpack.c.l.b16 %v323
        %v650 = vunpack.c.h.b16 %v323
        %v651 = vunpack.c.l.b16 %v324
        %v652 = vunpack.c.h.b16 %v324
        %v653 = vunpack.c.l.b16 %v325
        %v654 = vunpack.c.h.b16 %v325
        %v655 = vunpack.c.l.b16 %v326
        %v656 = vunpack.c.h.b16 %v326
        %v657 = vunpack.c.l.b16 %v327
        %v658 = vunpack.c.h.b16 %v327
        %v659 = vunpack.c.l.b16 %v328
        %v660 = vunpack.c.h.b16 %v328
        %v661 = vunpack.c.l.b16 %v329
        %v662 = vunpack.c.h.b16 %v329
        %v663 = vunpack.c.l.b16 %v330
        %v664 = vunpack.c.h.b16 %v330
        %v665 = vunpack.c.l.b16 %v331
        %v666 = vunpack.c.h.b16 %v331
        %v667 = vunpack.c.l.b16 %v332
        %v668 = vunpack.c.h.b16 %v332
        %v669 = vpack.c.b16 %v461, %v445
        %v670 = vpack.c.b16 %v462, %v446
        %v671 = vpack.c.b16 %v463, %v447
        %v672 = vpack.c.b16 %v464, %v448
        %v673 = vpack.c.b16 %v465, %v449
        %v674 = vpack.c.b16 %v466, %v450
        %v675 = vpack.c.b16 %v467, %v451
        %v676 = vpack.c.b16 %v468, %v452
        %v677 = vpack.c.b16 %v469, %v453
        %v678 = vpack.c.b16 %v470, %v454
        %v679 = vpack.c.b16 %v471, %v455
        %v680 = vpack.c.b16 %v472, %v456
        %v681 = vpack.c.b16 %v473, %v457
        %v682 = vpack.c.b16 %v474, %v458
        %v683 = vpack.c.b16 %v475, %v459
        %v684 = vpack.c.b16 %v476, %v460
        %v685 = vpack.c.b16 %v493, %v477
        %v686 = vpack.c.b16 %v494, %v478
        %v687 = vpack.c.b16 %v495, %v479
        %v688 = vpack.c.b16 %v496, %v480
        %v689 = vpack.c.b16 %v497, %v481
        %v690 = vpack.c.b16 %v498, %v482
        %v691 = vpack.c.b16 %v499, %v483
        %v692 = vpack.c.b16 %v500, %v484
        %v693 = vpack.c.b16 %v501, %v485
        %v694 = vpack.c.b16 %v502, %v486
        %v695 = vpack.c.b16 %v503, %v487
        %v696 = vpack.c.b16 %v504, %v488
        %v697 = vpack.c.b16 %v505, %v489
        %v698 = vpack.c.b16 %v506, %v490
        %v699 = vpack.c.b16 %v507, %v491
        %v700 = vpack.c.b16 %v508, %v492
        %v701 = vpack.c.b16 %v525, %v509
        %v702 = vpack.c.b16 %v526, %v510
        %v703 = vpack.c.b16 %v527, %v511
        %v704 = vpack.c.b16 %v528, %v512
        %v705 = vpack.c.b16 %v529, %v513
        %v706 = vpack.c.b16 %v530, %v514
        %v707 = vpack.c.b16 %v531, %v515
        %v708 = vpack.c.b16 %v532, %v516
        %v709 = vpack.c.b16 %v533, %v517
        %v710 = vpack.c.b16 %v534, %v518
        %v711 = vpack.c.b16 %v535, %v519
        %v712 = vpack.c.b16 %v536, %v520
        %v713 = vpack.c.b16 %v537, %v521
        %v714 = vpack.c.b16 %v538, %v522
        %v715 = vpack.c.b16 %v539, %v523
        %v716 = vpack.c.b16 %v540, %v524
        %v717 = vpack.c.b16 %v557, %v541
        %v718 = vpack.c.b16 %v558, %v542
        %v719 = vpack.c.b16 %v559, %v543
        %v720 = vpack.c.b16 %v560, %v544
        %v721 = vpack.c.b16 %v561, %v545
        %v722 = vpack.c.b16 %v562, %v546
        %v723 = vpack.c.b16 %v563, %v547
        %v724 = vpack.c.b16 %v564, %v548
        %v725 = vpack.c.b16 %v565, %v549
        %v726 = vpack.c.b16 %v566, %v550
        %v727 = vpack.c.b16 %v567, %v551
        %v728 = vpack.c.b16 %v568, %v552
        %v729 = vpack.c.b16 %v569, %v553
        %v730 = vpack.c.b16 %v570, %v554
        %v731 = vpack.c.b16 %v571, %v555
        %v732 = vpack.c.b16 %v572, %v556
        %v733 = vpack.c.b16 %v589, %v573
        %v734 = vpack.c.b16 %v590, %v574
        %v735 = vpack.c.b16 %v591, %v575
        %v736 = vpack.c.b16 %v592, %v576
        %v737 = vpack.c.b16 %v593, %v577
        %v738 = vpack.c.b16 %v594, %v578
        %v739 = vpack.c.b16 %v595, %v579
        %v740 = vpack.c.b16 %v596, %v580
        %v741 = vpack.c.b16 %v597, %v581
        %v742 = vpack.c.b16 %v598, %v582
        %v743 = vpack.c.b16 %v599, %v583
        %v744 = vpack.c.b16 %v600, %v584
        %v745 = vpack.c.b16 %v601, %v585
        %v746 = vpack.c.b16 %v602, %v586
        %v747 = vpack.c.b16 %v603, %v587
        %v748 = vpack.c.b16 %v604, %v588
        %v749 = vpack.c.b16 %v621, %v605
        %v750 = vpack.c.b16 %v622, %v606
        %v751 = vpack.c.b16 %v623, %v607
        %v752 = vpack.c.b16 %v624, %v608
        %v753 = vpack.c.b16 %v625, %v609
        %v754 = vpack.c.b16 %v626, %v610
        %v755 = vpack.c.b16 %v627, %v611
        %v756 = vpack.c.b16 %v628, %v612
        %v757 = vpack.c.b16 %v629, %v613
        %v758 = vpack.c.b16 %v630, %v614
        %v759 = vpack.c.b16 %v631, %v615
        %v760 = vpack.c.b16 %v632, %v616
        %v761 = vpack.c.b16 %v633, %v617
        %v762 = vpack.c.b16 %v634, %v618
        %v763 = vpack.c.b16 %v635, %v619
        %v764 = vpack.c.b16 %v636, %v620
        %v765 = vpack.c.b16 %v653, %v637
        %v766 = vpack.c.b16 %v654, %v638
        %v767 = vpack.c.b16 %v655, %v639
        %v768 = vpack.c.b16 %v656, %v640
        %v769 = vpack.c.b16 %v657, %v641
        %v770 = vpack.c.b16 %v658, %v642
        %v771 = vpack.c.b16 %v659, %v643
        %v772 = vpack.c.b16 %v660, %v644
        %v773 = vpack.c.b16 %v661, %v645
        %v774 = vpack.c.b16 %v662, %v646
        %v775 = vpack.c.b16 %v663, %v647
        %v776 = vpack.c.b16 %v664, %v648
        %v777 = vpack.c.b16 %v665, %v649
        %v778 = vpack.c.b16 %v666, %v650
        %v779 = vpack.c.b16 %v667, %v651
        %v780 = vpack.c.b16 %v668, %v652
        %vm877 = vcmask 883712
        %v879 = vsel %vm877, %v220, 0
        %vm881 = vcmask 1045504
        %v883 = vsel %vm881, %v765, 0
        %v886 = vsel %vm881, %v766, 0
        %v889 = vsel %vm881, %v767, 0
        %v892 = vsel %vm881, %v768, 0
        %v895 = vsel %vm881, %v769, 0
        %v898 = vsel %vm881, %v770, 0
        %v901 = vsel %vm881, %v771, 0
        %v904 = vsel %vm881, %v772, 0
        %v907 = vsel %vm881, %v773, 0
        %v910 = vsel %vm881, %v774, 0
        %v913 = vsel %vm881, %v775, 0
        %v916 = vsel %vm881, %v776, 0
        %v919 = vsel %vm881, %v777, 0
        %v922 = vsel %vm881, %v778, 0
        %v925 = vsel %vm881, %v779, 0
        %v928 = vsel %vm881, %v780, 0
        %930 = vmatpush.bf16.msra.mxu0 0
        %931 = vmatpush.bf16.msra.mxu0 %v883
        %932 = vmatpush.bf16.msra.mxu0 %v749
        %933 = vmatpush.bf16.msra.mxu0 %v733
        %934 = vmatpush.bf16.msra.mxu0 %v717
        %935 = vmatpush.bf16.msra.mxu0 %v701
        %936 = vmatpush.bf16.msra.mxu0 %v685
        %937 = vmatpush.bf16.msra.mxu0 %v669
        %938 = vmatmul.bf16.gmra.mxu0 %v879
        %v939 = vpop.f32.mrf.mxu0
        %v940 = vadd.f32 0.0, %v939
        %v941 = vpop.f32.mrf.mxu0
        %942 = vdwg.mxu0
        %943 = vmatpush.bf16.msra.mxu0 0
        %944 = vmatpush.bf16.msra.mxu0 %v886
        %945 = vmatpush.bf16.msra.mxu0 %v750
        %946 = vmatpush.bf16.msra.mxu0 %v734
        %947 = vmatpush.bf16.msra.mxu0 %v718
        %948 = vmatpush.bf16.msra.mxu0 %v702
        %949 = vmatpush.bf16.msra.mxu0 %v686
        %950 = vmatpush.bf16.msra.mxu0 %v670
        %951 = vmatmul.bf16.gmra.mxu0 %v879
        %v952 = vpop.f32.mrf.mxu0
        %v953 = vadd.f32 0.0, %v952
        %v954 = vpop.f32.mrf.mxu0
        %955 = vdwg.mxu0
        %956 = vmatpush.bf16.msra.mxu0 0
        %957 = vmatpush.bf16.msra.mxu0 %v889
        %958 = vmatpush.bf16.msra.mxu0 %v751
        %959 = vmatpush.bf16.msra.mxu0 %v735
        %960 = vmatpush.bf16.msra.mxu0 %v719
        %961 = vmatpush.bf16.msra.mxu0 %v703
        %962 = vmatpush.bf16.msra.mxu0 %v687
        %963 = vmatpush.bf16.msra.mxu0 %v671
        %964 = vmatmul.bf16.gmra.mxu0 %v879
        %v965 = vpop.f32.mrf.mxu0
        %v966 = vadd.f32 0.0, %v965
        %v967 = vpop.f32.mrf.mxu0
        %968 = vdwg.mxu0
        %969 = vmatpush.bf16.msra.mxu0 0
        %970 = vmatpush.bf16.msra.mxu0 %v892
        %971 = vmatpush.bf16.msra.mxu0 %v752
        %972 = vmatpush.bf16.msra.mxu0 %v736
        %973 = vmatpush.bf16.msra.mxu0 %v720
        %974 = vmatpush.bf16.msra.mxu0 %v704
        %975 = vmatpush.bf16.msra.mxu0 %v688
        %976 = vmatpush.bf16.msra.mxu0 %v672
        %977 = vmatmul.bf16.gmra.mxu0 %v879
        %v978 = vpop.f32.mrf.mxu0
        %v979 = vadd.f32 0.0, %v978
        %v980 = vpop.f32.mrf.mxu0
        %981 = vdwg.mxu0
        %982 = vmatpush.bf16.msra.mxu0 0
        %983 = vmatpush.bf16.msra.mxu0 %v895
        %984 = vmatpush.bf16.msra.mxu0 %v753
        %985 = vmatpush.bf16.msra.mxu0 %v737
        %986 = vmatpush.bf16.msra.mxu0 %v721
        %987 = vmatpush.bf16.msra.mxu0 %v705
        %988 = vmatpush.bf16.msra.mxu0 %v689
        %989 = vmatpush.bf16.msra.mxu0 %v673
        %990 = vmatmul.bf16.gmra.mxu0 %v879
        %v991 = vpop.f32.mrf.mxu0
        %v992 = vadd.f32 0.0, %v991
        %v993 = vpop.f32.mrf.mxu0
        %994 = vdwg.mxu0
        %995 = vmatpush.bf16.msra.mxu0 0
        %996 = vmatpush.bf16.msra.mxu0 %v898
        %997 = vmatpush.bf16.msra.mxu0 %v754
        %998 = vmatpush.bf16.msra.mxu0 %v738
        %999 = vmatpush.bf16.msra.mxu0 %v722
        %1000 = vmatpush.bf16.msra.mxu0 %v706
        %1001 = vmatpush.bf16.msra.mxu0 %v690
        %1002 = vmatpush.bf16.msra.mxu0 %v674
        %1003 = vmatmul.bf16.gmra.mxu0 %v879
        %v1004 = vpop.f32.mrf.mxu0
        %v1005 = vadd.f32 0.0, %v1004
        %v1006 = vpop.f32.mrf.mxu0
        %1007 = vdwg.mxu0
        %1008 = vmatpush.bf16.msra.mxu0 0
        %1009 = vmatpush.bf16.msra.mxu0 %v901
        %1010 = vmatpush.bf16.msra.mxu0 %v755
        %1011 = vmatpush.bf16.msra.mxu0 %v739
        %1012 = vmatpush.bf16.msra.mxu0 %v723
        %1013 = vmatpush.bf16.msra.mxu0 %v707
        %1014 = vmatpush.bf16.msra.mxu0 %v691
        %1015 = vmatpush.bf16.msra.mxu0 %v675
        %1016 = vmatmul.bf16.gmra.mxu0 %v879
        %v1017 = vpop.f32.mrf.mxu0
        %v1018 = vadd.f32 0.0, %v1017
        %v1019 = vpop.f32.mrf.mxu0
        %1020 = vdwg.mxu0
        %1021 = vmatpush.bf16.msra.mxu0 0
        %1022 = vmatpush.bf16.msra.mxu0 %v904
        %1023 = vmatpush.bf16.msra.mxu0 %v756
        %1024 = vmatpush.bf16.msra.mxu0 %v740
        %1025 = vmatpush.bf16.msra.mxu0 %v724
        %1026 = vmatpush.bf16.msra.mxu0 %v708
        %1027 = vmatpush.bf16.msra.mxu0 %v692
        %1028 = vmatpush.bf16.msra.mxu0 %v676
        %1029 = vmatmul.bf16.gmra.mxu0 %v879
        %v1030 = vpop.f32.mrf.mxu0
        %v1031 = vadd.f32 0.0, %v1030
        %v1032 = vpop.f32.mrf.mxu0
        %1033 = vdwg.mxu0
        %1034 = vmatpush.bf16.msra.mxu0 0
        %1035 = vmatpush.bf16.msra.mxu0 %v907
        %1036 = vmatpush.bf16.msra.mxu0 %v757
        %1037 = vmatpush.bf16.msra.mxu0 %v741
        %1038 = vmatpush.bf16.msra.mxu0 %v725
        %1039 = vmatpush.bf16.msra.mxu0 %v709
        %1040 = vmatpush.bf16.msra.mxu0 %v693
        %1041 = vmatpush.bf16.msra.mxu0 %v677
        %1042 = vmatmul.bf16.gmra.mxu0 %v879
        %v1043 = vpop.f32.mrf.mxu0
        %v1044 = vadd.f32 0.0, %v1043
        %v1045 = vpop.f32.mrf.mxu0
        %1046 = vdwg.mxu0
        %1047 = vmatpush.bf16.msra.mxu0 0
        %1048 = vmatpush.bf16.msra.mxu0 %v910
        %1049 = vmatpush.bf16.msra.mxu0 %v758
        %1050 = vmatpush.bf16.msra.mxu0 %v742
        %1051 = vmatpush.bf16.msra.mxu0 %v726
        %1052 = vmatpush.bf16.msra.mxu0 %v710
        %1053 = vmatpush.bf16.msra.mxu0 %v694
        %1054 = vmatpush.bf16.msra.mxu0 %v678
        %1055 = vmatmul.bf16.gmra.mxu0 %v879
        %v1056 = vpop.f32.mrf.mxu0
        %v1057 = vadd.f32 0.0, %v1056
        %v1058 = vpop.f32.mrf.mxu0
        %1059 = vdwg.mxu0
        %1060 = vmatpush.bf16.msra.mxu0 0
        %1061 = vmatpush.bf16.msra.mxu0 %v913
        %1062 = vmatpush.bf16.msra.mxu0 %v759
        %1063 = vmatpush.bf16.msra.mxu0 %v743
        %1064 = vmatpush.bf16.msra.mxu0 %v727
        %1065 = vmatpush.bf16.msra.mxu0 %v711
        %1066 = vmatpush.bf16.msra.mxu0 %v695
        %1067 = vmatpush.bf16.msra.mxu0 %v679
        %1068 = vmatmul.bf16.gmra.mxu0 %v879
        %v1069 = vpop.f32.mrf.mxu0
        %v1070 = vadd.f32 0.0, %v1069
        %v1071 = vpop.f32.mrf.mxu0
        %1072 = vdwg.mxu0
        %1073 = vmatpush.bf16.msra.mxu0 0
        %1074 = vmatpush.bf16.msra.mxu0 %v916
        %1075 = vmatpush.bf16.msra.mxu0 %v760
        %1076 = vmatpush.bf16.msra.mxu0 %v744
        %1077 = vmatpush.bf16.msra.mxu0 %v728
        %1078 = vmatpush.bf16.msra.mxu0 %v712
        %1079 = vmatpush.bf16.msra.mxu0 %v696
        %1080 = vmatpush.bf16.msra.mxu0 %v680
        %1081 = vmatmul.bf16.gmra.mxu0 %v879
        %v1082 = vpop.f32.mrf.mxu0
        %v1083 = vadd.f32 0.0, %v1082
        %v1084 = vpop.f32.mrf.mxu0
        %1085 = vdwg.mxu0
        %1086 = vmatpush.bf16.msra.mxu0 0
        %1087 = vmatpush.bf16.msra.mxu0 %v919
        %1088 = vmatpush.bf16.msra.mxu0 %v761
        %1089 = vmatpush.bf16.msra.mxu0 %v745
        %1090 = vmatpush.bf16.msra.mxu0 %v729
        %1091 = vmatpush.bf16.msra.mxu0 %v713
        %1092 = vmatpush.bf16.msra.mxu0 %v697
        %1093 = vmatpush.bf16.msra.mxu0 %v681
        %1094 = vmatmul.bf16.gmra.mxu0 %v879
        %v1095 = vpop.f32.mrf.mxu0
        %v1096 = vadd.f32 0.0, %v1095
        %v1097 = vpop.f32.mrf.mxu0
        %1098 = vdwg.mxu0
        %1099 = vmatpush.bf16.msra.mxu0 0
        %1100 = vmatpush.bf16.msra.mxu0 %v922
        %1101 = vmatpush.bf16.msra.mxu0 %v762
        %1102 = vmatpush.bf16.msra.mxu0 %v746
        %1103 = vmatpush.bf16.msra.mxu0 %v730
        %1104 = vmatpush.bf16.msra.mxu0 %v714
        %1105 = vmatpush.bf16.msra.mxu0 %v698
        %1106 = vmatpush.bf16.msra.mxu0 %v682
        %1107 = vmatmul.bf16.gmra.mxu0 %v879
        %v1108 = vpop.f32.mrf.mxu0
        %v1109 = vadd.f32 0.0, %v1108
        %v1110 = vpop.f32.mrf.mxu0
        %1111 = vdwg.mxu0
        %1112 = vmatpush.bf16.msra.mxu0 0
        %1113 = vmatpush.bf16.msra.mxu0 %v925
        %1114 = vmatpush.bf16.msra.mxu0 %v763
        %1115 = vmatpush.bf16.msra.mxu0 %v747
        %1116 = vmatpush.bf16.msra.mxu0 %v731
        %1117 = vmatpush.bf16.msra.mxu0 %v715
        %1118 = vmatpush.bf16.msra.mxu0 %v699
        %1119 = vmatpush.bf16.msra.mxu0 %v683
        %1120 = vmatmul.bf16.gmra.mxu0 %v879
        %v1121 = vpop.f32.mrf.mxu0
        %v1122 = vadd.f32 0.0, %v1121
        %v1123 = vpop.f32.mrf.mxu0
        %1124 = vdwg.mxu0
        %1125 = vmatpush.bf16.msra.mxu0 0
        %1126 = vmatpush.bf16.msra.mxu0 %v928
        %1127 = vmatpush.bf16.msra.mxu0 %v764
        %1128 = vmatpush.bf16.msra.mxu0 %v748
        %1129 = vmatpush.bf16.msra.mxu0 %v732
        %1130 = vmatpush.bf16.msra.mxu0 %v716
        %1131 = vmatpush.bf16.msra.mxu0 %v700
        %1132 = vmatpush.bf16.msra.mxu0 %v684
        %1133 = vmatmul.bf16.gmra.mxu0 %v879
        %v1134 = vpop.f32.mrf.mxu0
        %v1135 = vadd.f32 0.0, %v1134
        %v1136 = vpop.f32.mrf.mxu0
        %1137 = vdwg.mxu0
        %v1138 = vpack.c.bf16 %v953, %v940
        %v1139 = vpack.c.bf16 %v979, %v966
        %v1140 = vpack.c.bf16 %v1005, %v992
        %v1141 = vpack.c.bf16 %v1031, %v1018
        %v1142 = vpack.c.bf16 %v1057, %v1044
        %v1143 = vpack.c.bf16 %v1083, %v1070
        %v1144 = vpack.c.bf16 %v1109, %v1096
        %v1145 = vpack.c.bf16 %v1135, %v1122
        %v1154 = vrot.slane %v1138, 2
        %v1155 = vrot.slane %v1139, 4
        %v1156 = vrot.slane %v1139, 6
        %v1157 = vrot.slane %v1140, 2
        %v1158 = vrot.slane %v1141, 4
        %v1159 = vrot.slane %v1141, 6
        %v1160 = vrot.slane %v1142, 2
        %v1161 = vrot.slane %v1143, 4
        %v1162 = vrot.slane %v1143, 6
        %v1163 = vrot.slane %v1144, 2
        %v1164 = vrot.slane %v1145, 4
        %v1165 = vrot.slane %v1145, 6
        %vm1166 = vcmask 1041408
        %v1169 = vsel %vm1166, %v1138, %v1154
        %vm1170 = vcmask 1045508
        %v1173 = vsel %vm1170, %v1155, %v1156
        %vm1174 = vcmask 1043456
        %v1175 = vsel %vm1174, %v1169, %v1173
        %v1178 = vsel %vm1166, %v1140, %v1157
        %v1181 = vsel %vm1170, %v1158, %v1159
        %v1182 = vsel %vm1174, %v1178, %v1181
        %v1185 = vsel %vm1166, %v1142, %v1160
        %v1188 = vsel %vm1170, %v1161, %v1162
        %v1189 = vsel %vm1174, %v1185, %v1188
        %v1192 = vsel %vm1166, %v1144, %v1163
        %v1195 = vsel %vm1170, %v1164, %v1165
        %v1196 = vsel %vm1174, %v1192, %v1195
        %1201 = vst [vmem:[%s191] sm:$0xff] %v1175
        %1202 = vst [vmem:[%s191 + $0x8] sm:$0xff] %v1182
        %1203 = vst [vmem:[%s191 + $0x10] sm:$0xff] %v1189
        %1204 = vst [vmem:[%s191 + $0x18] sm:$0xff] %v1196
        %v1205 = vsel %vm1174, %v940, 0.0
        %v1206 = vsel %vm1174, %v953, 0.0
        %v1207 = vadd.f32 %v1205, %v1206
        %v1208 = vsel %vm1174, %v966, 0.0
        %v1209 = vadd.f32 %v1207, %v1208
        %v1210 = vsel %vm1174, %v979, 0.0
        %v1211 = vadd.f32 %v1209, %v1210
        %v1212 = vsel %vm1174, %v992, 0.0
        %v1213 = vadd.f32 %v1211, %v1212
        %v1214 = vsel %vm1174, %v1005, 0.0
        %v1215 = vadd.f32 %v1213, %v1214
        %v1216 = vsel %vm1174, %v1018, 0.0
        %v1217 = vadd.f32 %v1215, %v1216
        %v1218 = vsel %vm1174, %v1031, 0.0
        %v1219 = vadd.f32 %v1217, %v1218
        %v1220 = vsel %vm1174, %v1044, 0.0
        %v1221 = vadd.f32 %v1219, %v1220
        %v1222 = vsel %vm1174, %v1057, 0.0
        %v1223 = vadd.f32 %v1221, %v1222
        %v1224 = vsel %vm1174, %v1070, 0.0
        %v1225 = vadd.f32 %v1223, %v1224
        %v1226 = vsel %vm1174, %v1083, 0.0
        %v1227 = vadd.f32 %v1225, %v1226
        %v1228 = vsel %vm1174, %v1096, 0.0
        %v1229 = vadd.f32 %v1227, %v1228
        %v1230 = vsel %vm1174, %v1109, 0.0
        %v1231 = vadd.f32 %v1229, %v1230
        %v1232 = vsel %vm1174, %v1122, 0.0
        %v1233 = vadd.f32 %v1231, %v1232
        %v1234 = vsel %vm1174, %v1135, 0.0
        %v1235 = vadd.f32 %v1233, %v1234
        %1236 = vadd.xlane.f32.xlu0 %v1235
        %v1237 = vpop.xlane.xlu0 %1236
        %vm1238 = vcmask 3072
        %1239 = vst.msk [vmem:[%s218] sm:$0xf] %vm1238, %v1237
        %v1240 = vmul.f32 %v940, %v940
        %v1241 = vmul.f32 %v953, %v953
        %v1242 = vmul.f32 %v966, %v966
        %v1243 = vmul.f32 %v979, %v979
        %v1244 = vmul.f32 %v992, %v992
        %v1245 = vmul.f32 %v1005, %v1005
        %v1246 = vmul.f32 %v1018, %v1018
        %v1247 = vmul.f32 %v1031, %v1031
        %v1248 = vmul.f32 %v1044, %v1044
        %v1249 = vmul.f32 %v1057, %v1057
        %v1250 = vmul.f32 %v1070, %v1070
        %v1251 = vmul.f32 %v1083, %v1083
        %v1252 = vmul.f32 %v1096, %v1096
        %v1253 = vmul.f32 %v1109, %v1109
        %v1254 = vmul.f32 %v1122, %v1122
        %v1255 = vmul.f32 %v1135, %v1135
        %v1256 = vsel %vm1174, %v1240, 0.0
        %v1257 = vsel %vm1174, %v1241, 0.0
        %v1258 = vadd.f32 %v1256, %v1257
        %v1259 = vsel %vm1174, %v1242, 0.0
        %v1260 = vadd.f32 %v1258, %v1259
        %v1261 = vsel %vm1174, %v1243, 0.0
        %v1262 = vadd.f32 %v1260, %v1261
        %v1263 = vsel %vm1174, %v1244, 0.0
        %v1264 = vadd.f32 %v1262, %v1263
        %v1265 = vsel %vm1174, %v1245, 0.0
        %v1266 = vadd.f32 %v1264, %v1265
        %v1267 = vsel %vm1174, %v1246, 0.0
        %v1268 = vadd.f32 %v1266, %v1267
        %v1269 = vsel %vm1174, %v1247, 0.0
        %v1270 = vadd.f32 %v1268, %v1269
        %v1271 = vsel %vm1174, %v1248, 0.0
        %v1272 = vadd.f32 %v1270, %v1271
        %v1273 = vsel %vm1174, %v1249, 0.0
        %v1274 = vadd.f32 %v1272, %v1273
        %v1275 = vsel %vm1174, %v1250, 0.0
        %v1276 = vadd.f32 %v1274, %v1275
        %v1277 = vsel %vm1174, %v1251, 0.0
        %v1278 = vadd.f32 %v1276, %v1277
        %v1279 = vsel %vm1174, %v1252, 0.0
        %v1280 = vadd.f32 %v1278, %v1279
        %v1281 = vsel %vm1174, %v1253, 0.0
        %v1282 = vadd.f32 %v1280, %v1281
        %v1283 = vsel %vm1174, %v1254, 0.0
        %v1284 = vadd.f32 %v1282, %v1283
        %v1285 = vsel %vm1174, %v1255, 0.0
        %v1286 = vadd.f32 %v1284, %v1285
        %1287 = vadd.xlane.f32.xlu0 %v1286
        %v1288 = vpop.xlane.xlu0 %1287
        %vm1289 = vcmask 11272
        %1290 = vst.msk [vmem:[%s218] sm:$0xf] %vm1289, %v1288
        %s1291 = sand.u32 %s89, 1
        %s1292 = scalar_lea.sflag [#allocation3], %s1291
        %s1293 = sand.u32 %s89, 1
        %s1294 = smul.addr %s1293, 32
        %s1295 = scalar_lea.vmem [#allocation2], %s1294
        %p1296 = scmp.lt.s32.totalorder %s22, 1
        %s1297 = scalar_select %p1296, %s22, 1
        %p1298 = scmp.lt.s32.totalorder %s23, 0
        %s1299 = scalar_select %p1298, %s23, 0
        %s1300 = sadd.s32 %s1299, %s1297
        %s1301 = smul.addr %s1300, 4
        %s1302 = scalar_lea.vmem %s3, %s1301
        // Predicated region
        $region29: #{tpu_custom_call.1} parent=27 // pred_check
          %p1303 = pneg %p99
        $region30: #{tpu_custom_call.1} parent=27 // pred_check_branch
          %1305 = sbr.rel (%p1303) target = $region32
        $region31: #{tpu_custom_call.1} parent=27 // pred_region
          %s1306 = smul.u32 16, %s23
          %1308 = vsyncadd %s1292, 0
          %s1309 = smul.addr %s22, 16
          %s1310 = sadd.s32 %s1306, %s1309
          %s1311 = smul.addr %s1310, 2
          %s1312 = scalar_lea.hbm %s2, %s1311
          %s1314 = sshll.u32 %s1295, 4
          %s1315 = int_to_ptr.vmem [resolvable:$true] %s1314
          %s1316 = sshll.u32 %s1312, 4
          %s1317 = int_to_ptr.hbm [resolvable:$true] %s1316
          %1319 = dma.vmem_to_hbm [thread:$0]  %s1315, 512, %s1317, %s1292
        $region32: #{tpu_custom_call.1} parent=27 // pred_fallthru
          _
        // Predicated region
        $region33: #{tpu_custom_call.1} parent=27 // pred_check
          %p1320 = pneg %p127
        $region34: #{tpu_custom_call.1} parent=27 // pred_check_branch
          %1322 = sbr.rel (%p1320) target = $region36
        $region35: #{tpu_custom_call.1} parent=27 // pred_region
          _
        $region36: #{tpu_custom_call.1} parent=27 // pred_fallthru
          _
      $region28: #{tpu_custom_call.1} parent=5 // pred_fallthru
        _
      %p1323 = scmp.le.s32.totalorder 2, %s13
      // Predicated region
      $region37: #{tpu_custom_call.1} parent=5 // pred_check
        %p1324 = pneg %p1323
      $region38: #{tpu_custom_call.1} parent=5 // pred_check_branch
        %1326 = sbr.rel (%p1324) target = $region40
      $region39: #{tpu_custom_call.1} parent=5 // pred_region
        %s1327 = ssub.s32 %s13, 2
        // Predicated region
        $region41: #{tpu_custom_call.1} parent=39 // pred_check
          %p1328 = pneg %p105
        $region42: #{tpu_custom_call.1} parent=39 // pred_check_branch
          %1330 = sbr.rel (%p1328) target = $region44
        $region43: #{tpu_custom_call.1} parent=39 // pred_region
          %s1331 = sand.u32 %s90, 1
          %s1332 = scalar_lea.sflag [#allocation3], %s1331
          %s1333 = sand.u32 %s90, 1
          %s1334 = smul.addr %s1333, 32
          %s1335 = scalar_lea.vmem [#allocation2], %s1334
          %1337 = dma.done %s1332, 512
        $region44: #{tpu_custom_call.1} parent=39 // pred_fallthru
          _
        // Predicated region
        $region45: #{tpu_custom_call.1} parent=39 // pred_check
          %p1338 = pneg %p133
        $region46: #{tpu_custom_call.1} parent=39 // pred_check_branch
          %1340 = sbr.rel (%p1338) target = $region48
        $region47: #{tpu_custom_call.1} parent=39 // pred_region
          %p1341 = scmp.lt.s32.totalorder %s24, 1
          %s1342 = scalar_select %p1341, %s24, 1
          %p1343 = scmp.lt.s32.totalorder %s25, 0
          %s1344 = scalar_select %p1343, %s25, 0
          %s1345 = sadd.s32 %s1344, %s1342
          %s1346 = smul.addr %s1345, 4
          %s1347 = scalar_lea.vmem %s3, %s1346
        $region48: #{tpu_custom_call.1} parent=39 // pred_fallthru
          _
      $region40: #{tpu_custom_call.1} parent=5 // pred_fallthru
        _
    $region6: #{tpu_custom_call.1} parent=1 // loop_footer
      %s17 = sadd.s32 1, %s13
    $region7: #{tpu_custom_call.1} parent=1 // loop_footer_branch
      %12 = sbr.rel target = $region3
    $region8: #{tpu_custom_call.1} parent=1 // loop_exit
      _
    %1348 = vsyncpa [#allocation3], 1
    %s1349 = scalar_lea.sflag [#allocation3], 1
    %1350 = vsyncpa %s1349, 1

</llo_original>
